<compile_context>
chip_gen: v5e
topology: v5e:2x2
jax: 0.10.0
libtpu: 0.0.40
codegen_flags: <defaults>
</compile_context>

<pallas_src>
import functools

import jax
import jax.numpy as jnp
from jax import lax
from jax.experimental import pallas as pl
from jax.experimental.pallas import tpu as pltpu


def _round_up(x, m):
    return ((x + m - 1) // m) * m


def _cdiv(a, b):
    return -(-a // b)


def _critic_kernel(x_ref, w_ref, b_ref, o_ref, *, k_in, cdt):
    x = x_ref[...]                                    # [TM, k_in] (compute dtype)

    # Static slices of the resident transposed-weight slab (already in cdt,
    # 16-row-aligned blocks -> no masked/misaligned sublane loads in bf16).
    w1t = w_ref[0:64, 0:k_in]                         # [64, k_in]
    w2t = w_ref[64:96, 0:64]                          # [32, 64]
    w3t = w_ref[96:112, 0:32]                         # [16, 32]
    w4t = w_ref[112:113, 0:16]                        # [1, 16]

    # Biases as [out, 1] f32 columns (broadcast along the TM lane dim).
    b1 = b_ref[0:64, :]                               # [64, 1]
    b2 = b_ref[64:96, :]                              # [32, 1]
    b3 = b_ref[96:112, :]                             # [16, 1]
    b4 = b_ref[112:113, :]                            # [1, 1]

    # fc1: contract the feature dim of the natural [TM, k_in] tile with the
    # feature dim of W1^T (trans_b form -> no transpose/relayout of x).
    h = lax.dot_general(w1t, x, (((1,), (1,)), ((), ())),
                        preferred_element_type=jnp.float32)               # [64, TM]
    h = jnp.maximum(h + b1, 0.0)

    # fc2 + ReLU.
    h = jnp.dot(w2t, h.astype(cdt), preferred_element_type=jnp.float32)   # [32, TM]
    h = jnp.maximum(h + b2, 0.0)

    # fc3 + ReLU.
    h = jnp.dot(w3t, h.astype(cdt), preferred_element_type=jnp.float32)   # [16, TM]
    h = jnp.maximum(h + b3, 0.0)

    # fc4: [1,16] @ [16,TM] -> lane-dense [1, TM] output row, no transpose.
    q = jnp.dot(w4t, h.astype(cdt), preferred_element_type=jnp.float32) + b4
    o_ref[...] = q.reshape(o_ref.shape)


def pack_critic_params(params, state_dim, action_dim, *, use_bf16=True):
    """Pack the 4 (W, b) pairs into one transposed-weight slab (bf16 or f32)
    and one f32 bias-column slab."""
    (w1, b1), (w2, b2), (w3, b3), (w4, b4) = params
    k_raw = state_dim + action_dim
    assert k_raw <= 128, "state_dim + action_dim must be <= 128"
    assert w1.shape == (k_raw, 64)
    wdt = jnp.bfloat16 if use_bf16 else jnp.float32

    # Rows = output units (16-row-aligned blocks), lanes = input units.
    wslab = jnp.zeros((128, 128), wdt)
    wslab = wslab.at[0:64, 0:k_raw].set(w1.T.astype(wdt))      # fc1: [64, k_raw]
    wslab = wslab.at[64:96, 0:64].set(w2.T.astype(wdt))        # fc2: [32, 64]
    wslab = wslab.at[96:112, 0:32].set(w3.T.astype(wdt))       # fc3: [16, 32]
    wslab = wslab.at[112:113, 0:16].set(w4.T.astype(wdt))      # fc4: [1, 16]

    # Biases as a single f32 column ([out, 1] blocks stacked on sublanes).
    bslab = jnp.zeros((128, 1), jnp.float32)
    bslab = bslab.at[0:64, 0].set(b1.reshape(-1).astype(jnp.float32))
    bslab = bslab.at[64:96, 0].set(b2.reshape(-1).astype(jnp.float32))
    bslab = bslab.at[96:112, 0].set(b3.reshape(-1).astype(jnp.float32))
    bslab = bslab.at[112, 0].set(b4.reshape(-1)[0].astype(jnp.float32))
    return wslab, bslab


def _pick_tm(n, tm_max):
    """Batch tile: single tile for small n; otherwise 256-aligned tiles with
    >=2 (even where possible) grid steps so both v7x TensorCores get work.
    Keep tm_max <= 2048 on v5e (16 MiB scoped-VMEM default)."""
    if n < 512:
        return _round_up(max(n, 1), 16)
    cap = max(256, (tm_max // 256) * 256)
    steps = max(2, _cdiv(n, cap))
    if steps % 2:
        steps += 1
    return max(256, min(_round_up(_cdiv(n, steps), 256), cap))


def critic_small_forward(state, action, packed, *, tm=2048):
    """Q(s,a) forward. state: [N,S], action: [N,A] -> [N,1] (float32)."""
    wslab, bslab = packed
    n, s_dim = state.shape
    a_dim = action.shape[1]
    k_raw = s_dim + a_dim
    k_in = _round_up(k_raw, 16)
    assert wslab.shape == (128, 128), wslab.shape
    assert bslab.shape == (128, 1), bslab.shape
    cdt = wslab.dtype                       # compute dtype follows the packed slab

    tm_eff = _pick_tm(n, tm)
    g = _cdiv(n, tm_eff)
    n_pad = g * tm_eff

    # Single fused concat + feature/batch zero-pad + cast -> one lane-aligned
    # [n_pad, k_in] input in its natural layout (fc1 contracts its lane dim).
    x = jnp.concatenate([state, action], axis=1).astype(cdt)
    x = jnp.pad(x, ((0, n_pad - n), (0, k_in - k_raw)))

    kernel = functools.partial(_critic_kernel, k_in=k_in, cdt=cdt)

    out = pl.pallas_call(
        kernel,
        out_shape=jax.ShapeDtypeStruct((g, 1, tm_eff), jnp.float32),
        grid_spec=pltpu.PrefetchScalarGridSpec(
            num_scalar_prefetch=0,
            grid=(g,),
            in_specs=[
                pl.BlockSpec((tm_eff, k_in), lambda i: (i, 0)),   # batch tile
                pl.BlockSpec((128, 128), lambda i: (0, 0)),       # resident weights
                pl.BlockSpec((128, 1), lambda i: (0, 0)),         # resident biases
            ],
            out_specs=pl.BlockSpec((1, 1, tm_eff), lambda i: (i, 0, 0)),
        ),
        compiler_params=pltpu.CompilerParams(
            dimension_semantics=("parallel",)),
    )(x, wslab, bslab)

    return out.reshape(-1)[:n].reshape(n, 1)


def init_params(key, state_dim, action_dim):
    """PyTorch-style uniform(+/- 1/sqrt(fan_in)) init. Weights stored [in, out]."""
    dims = [(state_dim + action_dim, 64), (64, 32), (32, 16), (16, 1)]
    params = []
    for fan_in, fan_out in dims:
        key, kw, kb = jax.random.split(key, 3)
        bound = 1.0 / jnp.sqrt(jnp.float32(fan_in))
        w = jax.random.uniform(kw, (fan_in, fan_out), jnp.float32, -bound, bound)
        b = jax.random.uniform(kb, (1, fan_out), jnp.float32, -bound, bound)
        params.append((w, b))
    return params


if __name__ == "__main__":
    state_dim, action_dim = 12, 4

    key = jax.random.PRNGKey(0)
    k_params, k_s1, k_a1, k_s2, k_a2 = jax.random.split(key, 5)

    params = init_params(k_params, state_dim, action_dim)
    packed_f32 = pack_critic_params(params, state_dim, action_dim, use_bf16=False)
    packed_bf16 = pack_critic_params(params, state_dim, action_dim, use_bf16=True)

    def ref_forward(s, a, ps):
        x = jnp.concatenate([s, a], axis=1)
        (w1, b1), (w2, b2), (w3, b3), (w4, b4) = ps
        x = jnp.maximum(x @ w1 + b1, 0.0)
        x = jnp.maximum(x @ w2 + b2, 0.0)
        x = jnp.maximum(x @ w3 + b3, 0.0)
        return x @ w4 + b4

    # --- small batch (single grid step) ---
    batch = 8
    state = jax.random.normal(k_s1, (batch, state_dim), jnp.float32)
    action = jax.random.normal(k_a1, (batch, action_dim), jnp.float32)
    ref = ref_forward(state, action, params)

    q_f32 = critic_small_forward(state, action, packed_f32)
    jax.block_until_ready(q_f32)
    assert q_f32.shape == (batch, 1), q_f32.shape
    assert jnp.allclose(q_f32, ref, atol=1e-4, rtol=1e-4), "f32 mismatch vs reference"

    q_bf16 = critic_small_forward(state, action, packed_bf16)
    jax.block_until_ready(q_bf16)
    assert jnp.allclose(q_bf16, ref, atol=2e-2, rtol=2e-2), "bf16 mismatch vs reference"

    # --- larger ragged batch exercising the multi-step pipelined grid ---
    batch2 = 1000
    state2 = jax.random.normal(k_s2, (batch2, state_dim), jnp.float32)
    action2 = jax.random.normal(k_a2, (batch2, action_dim), jnp.float32)
    ref2 = ref_forward(state2, action2, params)

    q2 = critic_small_forward(state2, action2, packed_bf16, tm=256)
    jax.block_until_ready(q2)
    assert q2.shape == (batch2, 1), q2.shape
    assert jnp.allclose(q2, ref2, atol=2e-2, rtol=2e-2), "grid-path bf16 mismatch"

    q2_f32 = critic_small_forward(state2, action2, packed_f32, tm=256)
    jax.block_until_ready(q2_f32)
    assert jnp.allclose(q2_f32, ref2, atol=1e-4, rtol=1e-4), "grid-path f32 mismatch"

    print("KERNEL_OK")
</pallas_src>

<mosaic_0001>
module attributes {stable_mosaic.version = 11 : i64} {
  func.func @_critic_kernel(%arg0: i32, %arg1: memref<16x16xf32, #tpu.memory_space<vmem>>, %arg2: memref<128x128xf32, #tpu.memory_space<vmem>>, %arg3: memref<128x1xf32, #tpu.memory_space<vmem>>, %arg4: memref<1x1x16xf32, #tpu.memory_space<vmem>>) attributes {dimension_semantics = [#tpu.dimension_semantics<parallel>], iteration_bounds = array<i64: 1>, scalar_prefetch = 0 : i64, scratch_operands = 0 : i64, tpu.core_type = #tpu.core_type<tc>, window_params = [{transform_indices = @transform_0, window_bounds = array<i64: 16, 16>}, {pipeline_mode = #tpu.pipeline_mode<synchronous>, transform_indices = @transform_1, window_bounds = array<i64: 128, 128>}, {pipeline_mode = #tpu.pipeline_mode<synchronous>, transform_indices = @transform_2, window_bounds = array<i64: 128, 1>}, {transform_indices = @transform_3, window_bounds = array<i64: 1, 1, 16>}]} {
    %c0 = arith.constant 0 : index
    %c0_0 = arith.constant 0 : index
    %0 = vector.load %arg1[%c0, %c0_0] : memref<16x16xf32, #tpu.memory_space<vmem>>, vector<16x16xf32>
    %c0_1 = arith.constant 0 : index
    %c0_2 = arith.constant 0 : index
    %1 = vector.load %arg2[%c0_1, %c0_2] : memref<128x128xf32, #tpu.memory_space<vmem>>, vector<64x16xf32>
    %c64 = arith.constant 64 : index
    %c0_3 = arith.constant 0 : index
    %2 = vector.load %arg2[%c64, %c0_3] : memref<128x128xf32, #tpu.memory_space<vmem>>, vector<32x64xf32>
    %c96 = arith.constant 96 : index
    %c0_4 = arith.constant 0 : index
    %3 = vector.load %arg2[%c96, %c0_4] : memref<128x128xf32, #tpu.memory_space<vmem>>, vector<16x32xf32>
    %c112 = arith.constant 112 : index
    %c0_5 = arith.constant 0 : index
    %4 = vector.load %arg2[%c112, %c0_5] : memref<128x128xf32, #tpu.memory_space<vmem>>, vector<1x16xf32>
    %c0_6 = arith.constant 0 : index
    %c0_7 = arith.constant 0 : index
    %5 = vector.load %arg3[%c0_6, %c0_7] : memref<128x1xf32, #tpu.memory_space<vmem>>, vector<64x1xf32>
    %c64_8 = arith.constant 64 : index
    %c0_9 = arith.constant 0 : index
    %6 = vector.load %arg3[%c64_8, %c0_9] : memref<128x1xf32, #tpu.memory_space<vmem>>, vector<32x1xf32>
    %c96_10 = arith.constant 96 : index
    %c0_11 = arith.constant 0 : index
    %7 = vector.load %arg3[%c96_10, %c0_11] : memref<128x1xf32, #tpu.memory_space<vmem>>, vector<16x1xf32>
    %c112_12 = arith.constant 112 : index
    %c0_13 = arith.constant 0 : index
    %8 = vector.load %arg3[%c112_12, %c0_13] : memref<128x1xf32, #tpu.memory_space<vmem>>, vector<1x1xf32>
    %cst = arith.constant dense<0.000000e+00> : vector<64x16xf32>
    %9 = tpu.matmul %1, %0, %cst {dimension_numbers = #tpu.dot_dimension_numbers<[1], [1], [0], [0], [0, 0, 1, 0], [], []>} : vector<64x16xf32>, vector<16x16xf32>, vector<64x16xf32> -> vector<64x16xf32>
    %10 = vector.broadcast %5 : vector<64x1xf32> to vector<64x16xf32>
    %11 = arith.addf %9, %10 : vector<64x16xf32>
    %cst_14 = arith.constant 0.000000e+00 : f32
    %12 = vector.broadcast %cst_14 : f32 to vector<64x16xf32>
    %13 = arith.maximumf %11, %12 : vector<64x16xf32>
    %cst_15 = arith.constant dense<0.000000e+00> : vector<32x16xf32>
    %14 = tpu.matmul %2, %13, %cst_15 {dimension_numbers = #tpu.dot_dimension_numbers<[1], [0], [0], [1], [0, 0, 1, 1], [], []>} : vector<32x64xf32>, vector<64x16xf32>, vector<32x16xf32> -> vector<32x16xf32>
    %15 = vector.broadcast %6 : vector<32x1xf32> to vector<32x16xf32>
    %16 = arith.addf %14, %15 : vector<32x16xf32>
    %cst_16 = arith.constant 0.000000e+00 : f32
    %17 = vector.broadcast %cst_16 : f32 to vector<32x16xf32>
    %18 = arith.maximumf %16, %17 : vector<32x16xf32>
    %cst_17 = arith.constant dense<0.000000e+00> : vector<16x16xf32>
    %19 = tpu.matmul %3, %18, %cst_17 {dimension_numbers = #tpu.dot_dimension_numbers<[1], [0], [0], [1], [0, 0, 1, 1], [], []>} : vector<16x32xf32>, vector<32x16xf32>, vector<16x16xf32> -> vector<16x16xf32>
    %20 = vector.broadcast %7 : vector<16x1xf32> to vector<16x16xf32>
    %21 = arith.addf %19, %20 : vector<16x16xf32>
    %cst_18 = arith.constant 0.000000e+00 : f32
    %22 = vector.broadcast %cst_18 : f32 to vector<16x16xf32>
    %23 = arith.maximumf %21, %22 : vector<16x16xf32>
    %cst_19 = arith.constant dense<0.000000e+00> : vector<1x16xf32>
    %24 = tpu.matmul %4, %23, %cst_19 {dimension_numbers = #tpu.dot_dimension_numbers<[1], [0], [0], [1], [0, 0, 1, 1], [], []>} : vector<1x16xf32>, vector<16x16xf32>, vector<1x16xf32> -> vector<1x16xf32>
    %25 = vector.broadcast %8 : vector<1x1xf32> to vector<1x16xf32>
    %26 = arith.addf %24, %25 : vector<1x16xf32>
    %27 = vector.shape_cast %26 : vector<1x16xf32> to vector<1x1x16xf32>
    %c0_20 = arith.constant 0 : index
    %c0_21 = arith.constant 0 : index
    %c0_22 = arith.constant 0 : index
    %28 = vector.load %arg4[%c0_20, %c0_21, %c0_22] : memref<1x1x16xf32, #tpu.memory_space<vmem>>, vector<1x1x16xf32>
    tpu.vector_store %arg4[%c0_20, %c0_21, %c0_22], %27 {strides = array<i32>} : memref<1x1x16xf32, #tpu.memory_space<vmem>>, vector<1x1x16xf32>,
    return
  }
  func.func @transform_0(%arg0: i32) -> (i32, i32) {
    %c0_i32 = arith.constant 0 : i32
    %c0_i32_0 = arith.constant 0 : i32
    return %arg0, %c0_i32 : i32, i32
  }
  func.func @transform_1(%arg0: i32) -> (i32, i32) {
    %c0_i32 = arith.constant 0 : i32
    %c0_i32_0 = arith.constant 0 : i32
    %c0_i32_1 = arith.constant 0 : i32
    return %c0_i32, %c0_i32_0 : i32, i32
  }
  func.func @transform_2(%arg0: i32) -> (i32, i32) {
    %c0_i32 = arith.constant 0 : i32
    %c0_i32_0 = arith.constant 0 : i32
    %c0_i32_1 = arith.constant 0 : i32
    return %c0_i32, %c0_i32_0 : i32, i32
  }
  func.func @transform_3(%arg0: i32) -> (i32, i32, i32) {
    %c0_i32 = arith.constant 0 : i32
    %c0_i32_0 = arith.constant 0 : i32
    %c0_i32_1 = arith.constant 0 : i32
    return %arg0, %c0_i32, %c0_i32_0 : i32, i32, i32
  }
}

</mosaic_0001>

<llo_original>
// kernel: tpu_custom_call.1
$region0: #{tpu_custom_call.1}
  #allocation0 [shape = 'u32[]', space=smem, size = 0x4, offset = 0x4, fixed_abs, tag = 'smem constant byte address 0x4 - core index']
  #allocation1 [shape = 'u32[72,128]{1,0:T(1,128)}', space=vmem, size = 0x9000, scoped, tag = 'internal scratch']
  %s0 = inlined_call_operand.hbm [shape: f32[16,16], index: 0, kind: input, shape index: {}]
  %s1 = inlined_call_operand.vmem [shape: f32[128,128], index: 1, kind: input, shape index: {}]
  %s2 = inlined_call_operand.vmem [shape: f32[128,1], index: 2, kind: input, shape index: {}]
  %s3 = inlined_call_operand.hbm [shape: f32[1,1,16], index: 3, kind: output, shape index: {}]
  %s4 = sld [smem:[#allocation0]]
  $region26: #{tpu_custom_call.1} parent=0
    _
  %s6 = ssub.s32 1, %s4
  %s7 = scalar_select 0, %s6, %s4
  $region1: #{tpu_custom_call.1} parent=0
    #allocation2 [shape = 'u8[8192]{0}', space=vmem, size = 0x2000, scoped, tag = 'input window, operand 0, single buffered']
    #allocation3 [shape = 's32[1]{0}', space=sflag, size = 0x4, scoped, tag = 'scoped memory for tpu_custom_call.1']
    #allocation4 [shape = 's32[1]{0}', space=sflag, size = 0x4, scoped, tag = 'scoped memory for tpu_custom_call.1']
    #allocation5 [shape = 'u8[512]{0}', space=vmem, size = 0x400, scoped, tag = 'output window, operand 0, single buffered']
    %8 = vsyncpa [#allocation3], 0
    %9 = vsyncpa [#allocation4], 0
    // Predicated region
    $region2: #{tpu_custom_call.1} parent=1 // pred_check
      _
    $region3: #{tpu_custom_call.1} parent=1 // pred_check_branch
      %11 = sbr.rel (0) target = $region5
    $region4: #{tpu_custom_call.1} parent=1 // pred_region
      %13 = vsyncadd [#allocation3], 0
      %s14 = sshll.u32 %s0, 4
      %s15 = int_to_ptr.hbm [resolvable:$true] %s14
      %s16 = sshll.u32 [#allocation2], 4
      %s17 = int_to_ptr.vmem [resolvable:$true] %s16
      %22 = dma.hbm_to_vmem [thread:$0]  %s15, 256, %s17, [#allocation3], 128, 128, 8
    $region5: #{tpu_custom_call.1} parent=1 // pred_fallthru
      _
    // Predicated region
    $region6: #{tpu_custom_call.1} parent=1 // pred_check
      _
    $region7: #{tpu_custom_call.1} parent=1 // pred_check_branch
      %24 = sbr.rel (0) target = $region9
    $region8: #{tpu_custom_call.1} parent=1 // pred_region
      _
    $region9: #{tpu_custom_call.1} parent=1 // pred_fallthru
      _
    // Predicated region
    $region10: #{tpu_custom_call.1} parent=1 // pred_check
      _
    $region11: #{tpu_custom_call.1} parent=1 // pred_check_branch
      %26 = sbr.rel (0) target = $region13
    $region12: #{tpu_custom_call.1} parent=1 // pred_region
      _
    $region13: #{tpu_custom_call.1} parent=1 // pred_fallthru
      _
    // Predicated region
    $region14: #{tpu_custom_call.1} parent=1 // pred_check
      _
    $region15: #{tpu_custom_call.1} parent=1 // pred_check_branch
      %28 = sbr.rel (0) target = $region17
    $region16: #{tpu_custom_call.1} parent=1 // pred_region
      %30 = dma.done [#allocation3], 256
    $region17: #{tpu_custom_call.1} parent=1 // pred_fallthru
      _
    %v31 = vld [vmem:[#allocation2] sm:$0xff]
    %v32 = vld [vmem:[#allocation2 + $0x8] sm:$0xff]
    %v33 = vld [vmem:[%s1] sm:$0xff]
    %v34 = vld [vmem:[%s1 + $0x8] sm:$0xff]
    %v35 = vld [vmem:[%s1 + $0x10] sm:$0xff]
    %v36 = vld [vmem:[%s1 + $0x18] sm:$0xff]
    %v37 = vld [vmem:[%s1 + $0x20] sm:$0xff]
    %v38 = vld [vmem:[%s1 + $0x28] sm:$0xff]
    %v39 = vld [vmem:[%s1 + $0x30] sm:$0xff]
    %v40 = vld [vmem:[%s1 + $0x38] sm:$0xff]
    %v41 = vld [vmem:[%s1 + $0x40] sm:$0xff]
    %v42 = vld [vmem:[%s1 + $0x48] sm:$0xff]
    %v43 = vld [vmem:[%s1 + $0x50] sm:$0xff]
    %v44 = vld [vmem:[%s1 + $0x58] sm:$0xff]
    %v45 = vld [vmem:[%s1 + $0x60] sm:$0xff]
    %v46 = vld [vmem:[%s1 + $0x68] sm:$0xff]
    %v47 = vld [vmem:[%s1 + $0x70] sm:$0x1]
    %v48 = vld [vmem:[%s2] sm:$0xff]
    %v49 = vld [vmem:[%s2 + $0x8] sm:$0xff]
    %v50 = vld [vmem:[%s2 + $0x10] sm:$0xff]
    %v51 = vld [vmem:[%s2 + $0x18] sm:$0xff]
    %v52 = vld [vmem:[%s2 + $0x20] sm:$0xff]
    %v53 = vld [vmem:[%s2 + $0x28] sm:$0xff]
    %v54 = vld [vmem:[%s2 + $0x30] sm:$0xff]
    %v55 = vld [vmem:[%s2 + $0x38] sm:$0xff]
    %v56 = vld [vmem:[%s2 + $0x40] sm:$0xff]
    %v57 = vld [vmem:[%s2 + $0x48] sm:$0xff]
    %v58 = vld [vmem:[%s2 + $0x50] sm:$0xff]
    %v59 = vld [vmem:[%s2 + $0x58] sm:$0xff]
    %v60 = vld [vmem:[%s2 + $0x60] sm:$0xff]
    %v61 = vld [vmem:[%s2 + $0x68] sm:$0xff]
    %v62 = vld [vmem:[%s2 + $0x70] sm:$0x1]
    %64 = vset.pattern.permute.xlu0 0
    %65 = vperm.xlu0 %64, %v48
    %v66 = vpop.permute.xlu0 %65
    %69 = vset.pattern.permute.xlu0 0
    %70 = vperm.xlu0 %69, %v49
    %v71 = vpop.permute.xlu0 %70
    %74 = vset.pattern.permute.xlu0 0
    %75 = vperm.xlu0 %74, %v50
    %v76 = vpop.permute.xlu0 %75
    %79 = vset.pattern.permute.xlu0 0
    %80 = vperm.xlu0 %79, %v51
    %v81 = vpop.permute.xlu0 %80
    %84 = vset.pattern.permute.xlu0 0
    %85 = vperm.xlu0 %84, %v52
    %v86 = vpop.permute.xlu0 %85
    %89 = vset.pattern.permute.xlu0 0
    %90 = vperm.xlu0 %89, %v53
    %v91 = vpop.permute.xlu0 %90
    %94 = vset.pattern.permute.xlu0 0
    %95 = vperm.xlu0 %94, %v54
    %v96 = vpop.permute.xlu0 %95
    %99 = vset.pattern.permute.xlu0 0
    %100 = vperm.xlu0 %99, %v55
    %v101 = vpop.permute.xlu0 %100
    %vm103 = vcmask 130048
    %v105 = vsel %vm103, %v33, 0
    %v108 = vsel %vm103, %v34, 0
    %v111 = vsel %vm103, %v35, 0
    %v114 = vsel %vm103, %v36, 0
    %v117 = vsel %vm103, %v37, 0
    %v120 = vsel %vm103, %v38, 0
    %v123 = vsel %vm103, %v39, 0
    %v126 = vsel %vm103, %v40, 0
    %v129 = vsel %vm103, %v31, 0
    %v132 = vsel %vm103, %v32, 0
    %134 = vmatpush.xpose.msra.mxu0 0.0
    %135 = vmatpush.xpose.msra.mxu0 0.0
    %136 = vmatpush.xpose.msra.mxu0 0.0
    %137 = vmatpush.xpose.msra.mxu0 0.0
    %138 = vmatpush.xpose.msra.mxu0 0.0
    %139 = vmatpush.xpose.msra.mxu0 0.0
    %140 = vmatpush.xpose.msra.mxu0 0.0
    %141 = vmatpush.xpose.msra.mxu0 0.0
    %142 = vmatpush.xpose.msra.mxu0 0.0
    %143 = vmatpush.xpose.msra.mxu0 0.0
    %144 = vmatpush.xpose.msra.mxu0 0.0
    %145 = vmatpush.xpose.msra.mxu0 0.0
    %146 = vmatpush.xpose.msra.mxu0 0.0
    %147 = vmatpush.xpose.msra.mxu0 0.0
    %148 = vmatpush.xpose.msra.mxu0 %v132
    %149 = vmatpush.xpose.msra.mxu0 %v129
    %150 = vmatmul.f32.gmra.mxu0 %v105
    %v151 = vpop.f32.mrf.mxu0
    %v152 = vadd.f32 %v66, %v151
    %153 = vmatmul.f32.gmra.mxu0 %v108
    %v154 = vpop.f32.mrf.mxu0
    %v155 = vadd.f32 %v71, %v154
    %156 = vmatmul.f32.gmra.mxu0 %v111
    %v157 = vpop.f32.mrf.mxu0
    %v158 = vadd.f32 %v76, %v157
    %159 = vmatmul.f32.gmra.mxu0 %v114
    %v160 = vpop.f32.mrf.mxu0
    %v161 = vadd.f32 %v81, %v160
    %162 = vmatmul.f32.gmra.mxu0 %v117
    %v163 = vpop.f32.mrf.mxu0
    %v164 = vadd.f32 %v86, %v163
    %165 = vmatmul.f32.gmra.mxu0 %v120
    %v166 = vpop.f32.mrf.mxu0
    %v167 = vadd.f32 %v91, %v166
    %168 = vmatmul.f32.gmra.mxu0 %v123
    %v169 = vpop.f32.mrf.mxu0
    %v170 = vadd.f32 %v96, %v169
    %171 = vmatmul.f32.gmra.mxu0 %v126
    %v172 = vpop.f32.mrf.mxu0
    %v173 = vadd.f32 %v101, %v172
    %174 = vdwg.mxu0
    %v175 = vmax.f32 %v152, 0.0
    %v176 = vmax.f32 %v155, 0.0
    %v177 = vmax.f32 %v158, 0.0
    %v178 = vmax.f32 %v161, 0.0
    %v179 = vmax.f32 %v164, 0.0
    %v180 = vmax.f32 %v167, 0.0
    %v181 = vmax.f32 %v170, 0.0
    %v182 = vmax.f32 %v173, 0.0
    %184 = vset.pattern.permute.xlu0 0
    %185 = vperm.xlu0 %184, %v56
    %v186 = vpop.permute.xlu0 %185
    %189 = vset.pattern.permute.xlu0 0
    %190 = vperm.xlu0 %189, %v57
    %v191 = vpop.permute.xlu0 %190
    %194 = vset.pattern.permute.xlu0 0
    %195 = vperm.xlu0 %194, %v58
    %v196 = vpop.permute.xlu0 %195
    %199 = vset.pattern.permute.xlu0 0
    %200 = vperm.xlu0 %199, %v59
    %v201 = vpop.permute.xlu0 %200
    %vm203 = vcmask 523264
    %v205 = vsel %vm203, %v41, 0
    %v208 = vsel %vm203, %v42, 0
    %v211 = vsel %vm203, %v43, 0
    %v214 = vsel %vm203, %v44, 0
    %216 = vmatpush.msra.mxu0 0.0
    %217 = vmatpush.msra.mxu0 0.0
    %218 = vmatpush.msra.mxu0 0.0
    %219 = vmatpush.msra.mxu0 0.0
    %220 = vmatpush.msra.mxu0 0.0
    %221 = vmatpush.msra.mxu0 0.0
    %222 = vmatpush.msra.mxu0 0.0
    %223 = vmatpush.msra.mxu0 0.0
    %224 = vmatpush.msra.mxu0 %v182
    %225 = vmatpush.msra.mxu0 %v181
    %226 = vmatpush.msra.mxu0 %v180
    %227 = vmatpush.msra.mxu0 %v179
    %228 = vmatpush.msra.mxu0 %v178
    %229 = vmatpush.msra.mxu0 %v177
    %230 = vmatpush.msra.mxu0 %v176
    %231 = vmatpush.msra.mxu0 %v175
    %232 = vmatmul.f32.gmra.mxu0 %v205
    %v233 = vpop.f32.mrf.mxu0
    %v234 = vadd.f32 %v186, %v233
    %235 = vmatmul.f32.gmra.mxu0 %v208
    %v236 = vpop.f32.mrf.mxu0
    %v237 = vadd.f32 %v191, %v236
    %238 = vmatmul.f32.gmra.mxu0 %v211
    %v239 = vpop.f32.mrf.mxu0
    %v240 = vadd.f32 %v196, %v239
    %241 = vmatmul.f32.gmra.mxu0 %v214
    %v242 = vpop.f32.mrf.mxu0
    %v243 = vadd.f32 %v201, %v242
    %244 = vdwg.mxu0
    %v245 = vmax.f32 %v234, 0.0
    %v246 = vmax.f32 %v237, 0.0
    %v247 = vmax.f32 %v240, 0.0
    %v248 = vmax.f32 %v243, 0.0
    %250 = vset.pattern.permute.xlu0 0
    %251 = vperm.xlu0 %250, %v60
    %v252 = vpop.permute.xlu0 %251
    %255 = vset.pattern.permute.xlu0 0
    %256 = vperm.xlu0 %255, %v61
    %v257 = vpop.permute.xlu0 %256
    %vm259 = vcmask 261120
    %v261 = vsel %vm259, %v45, 0
    %v264 = vsel %vm259, %v46, 0
    %266 = vmatpush.msra.mxu0 0.0
    %267 = vmatpush.msra.mxu0 0.0
    %268 = vmatpush.msra.mxu0 0.0
    %269 = vmatpush.msra.mxu0 0.0
    %270 = vmatpush.msra.mxu0 0.0
    %271 = vmatpush.msra.mxu0 0.0
    %272 = vmatpush.msra.mxu0 0.0
    %273 = vmatpush.msra.mxu0 0.0
    %274 = vmatpush.msra.mxu0 0.0
    %275 = vmatpush.msra.mxu0 0.0
    %276 = vmatpush.msra.mxu0 0.0
    %277 = vmatpush.msra.mxu0 0.0
    %278 = vmatpush.msra.mxu0 %v248
    %279 = vmatpush.msra.mxu0 %v247
    %280 = vmatpush.msra.mxu0 %v246
    %281 = vmatpush.msra.mxu0 %v245
    %282 = vmatmul.f32.gmra.mxu0 %v261
    %v283 = vpop.f32.mrf.mxu0
    %v284 = vadd.f32 %v252, %v283
    %285 = vmatmul.f32.gmra.mxu0 %v264
    %v286 = vpop.f32.mrf.mxu0
    %v287 = vadd.f32 %v257, %v286
    %288 = vdwg.mxu0
    %v289 = vmax.f32 %v284, 0.0
    %v290 = vmax.f32 %v287, 0.0
    %292 = vset.pattern.permute.xlu0 0
    %293 = vperm.xlu0 %292, %v62
    %v294 = vpop.permute.xlu0 %293
    %v297 = vsel %vm103, %v47, 0
    %299 = vmatpush.msra.mxu0 0.0
    %300 = vmatpush.msra.mxu0 0.0
    %301 = vmatpush.msra.mxu0 0.0
    %302 = vmatpush.msra.mxu0 0.0
    %303 = vmatpush.msra.mxu0 0.0
    %304 = vmatpush.msra.mxu0 0.0
    %305 = vmatpush.msra.mxu0 0.0
    %306 = vmatpush.msra.mxu0 0.0
    %307 = vmatpush.msra.mxu0 0.0
    %308 = vmatpush.msra.mxu0 0.0
    %309 = vmatpush.msra.mxu0 0.0
    %310 = vmatpush.msra.mxu0 0.0
    %311 = vmatpush.msra.mxu0 0.0
    %312 = vmatpush.msra.mxu0 0.0
    %313 = vmatpush.msra.mxu0 %v290
    %314 = vmatpush.msra.mxu0 %v289
    %315 = vmatmul.f32.gmra.mxu0 %v297
    %v316 = vpop.f32.mrf.mxu0
    %v317 = vadd.f32 %v294, %v316
    %318 = vdwg.mxu0
    %vm319 = vcmask 122880
    %320 = vst.msk [vmem:[#allocation5] sm:$0x1] %vm319, %v317
    // Predicated region
    $region18: #{tpu_custom_call.1} parent=1 // pred_check
      _
    $region19: #{tpu_custom_call.1} parent=1 // pred_check_branch
      %322 = sbr.rel (0) target = $region21
    $region20: #{tpu_custom_call.1} parent=1 // pred_region
      %324 = vsyncadd [#allocation4], 0
      %s326 = sshll.u32 [#allocation5], 4
      %s327 = int_to_ptr.vmem [resolvable:$true] %s326
      %s328 = sshll.u32 %s3, 4
      %s329 = int_to_ptr.hbm [resolvable:$true] %s328
      %331 = dma.vmem_to_hbm [thread:$0]  %s327, 16, %s329, [#allocation4]
    $region21: #{tpu_custom_call.1} parent=1 // pred_fallthru
      _
    // Predicated region
    $region22: #{tpu_custom_call.1} parent=1 // pred_check
      _
    $region23: #{tpu_custom_call.1} parent=1 // pred_check_branch
      %333 = sbr.rel (0) target = $region25
    $region24: #{tpu_custom_call.1} parent=1 // pred_region
      %335 = dma.done [#allocation4], 16
    $region25: #{tpu_custom_call.1} parent=1 // pred_fallthru
      _
    %336 = vsyncpa [#allocation3], 1
    %337 = vsyncpa [#allocation4], 1

</llo_original>
